<compile_context>
chip_gen: v7x
topology: tpu7x:2x2x1
jax: 0.10.0
libtpu: 0.0.40
codegen_flags: <defaults>
</compile_context>

<pallas_src>
import functools

import jax
import jax.numpy as jnp
from jax import lax
from jax.experimental import pallas as pl
from jax.experimental.pallas import tpu as pltpu

_LANE = 128
_MAX_LANE_CHUNKS = 256  # cap on unrolled 128-lane VPU-add chunks per grid step


def _round_up(x, m):
    return (x + m - 1) // m * m


def _round_down(x, m):
    return x // m * m


def _cdiv(a, b):
    return (a + b - 1) // b


# --------------------------------------------------------------------------- #
# Kernels
# --------------------------------------------------------------------------- #
def _avgpool_onepass_kernel(x_ref, o_ref, *, inv_hw, hw):
    """Single reduction step: block covers the full H*W row (thw == hw)."""
    n_full = hw // _LANE
    if n_full >= 2:
        # Elementwise VPU folding over lane-aligned 128-wide ref chunks, then a
        # single cross-lane (XLU) reduce per row tile.
        part = x_ref[:, :_LANE].astype(jnp.float32)
        for j in range(1, n_full):
            part = part + x_ref[:, j * _LANE:(j + 1) * _LANE].astype(jnp.float32)
        s = jnp.sum(part, axis=-1, keepdims=True)
        if hw % _LANE:
            tail = x_ref[:, n_full * _LANE:].astype(jnp.float32)
            s = s + jnp.sum(tail, axis=-1, keepdims=True)
    else:
        s = jnp.sum(x_ref[...].astype(jnp.float32), axis=-1, keepdims=True)
    o_ref[...] = (s * inv_hw).astype(o_ref.dtype)


def _avgpool_tiled_kernel(x_ref, o_ref, acc_ref, *, inv_hw, hw, thw):
    """2-D grid (rows, hw blocks); reduction axis last; (tr,128) f32 resident acc."""
    k = pl.program_id(1)

    @pl.when(k == 0)
    def _():
        acc_ref[...] = jnp.zeros_like(acc_ref)

    ragged = (hw % thw) != 0  # static: last H*W block has undefined tail lanes
    if ragged:
        lane_iota = lax.broadcasted_iota(jnp.int32, (1, _LANE), 1)

    part = None
    for j in range(thw // _LANE):
        xj = x_ref[:, j * _LANE:(j + 1) * _LANE].astype(jnp.float32)
        if ragged:
            col = lane_iota + (k * thw + j * _LANE)
            xj = jnp.where(col < hw, xj, 0.0)  # mask garbage tail lanes
        part = xj if part is None else part + xj
    acc_ref[...] += part  # pure VPU accumulation; no per-step XLU reduce

    @pl.when(k == pl.num_programs(1) - 1)
    def _():
        s = jnp.sum(acc_ref[...], axis=-1, keepdims=True)
        o_ref[...] = (s * inv_hw).astype(o_ref.dtype)


# --------------------------------------------------------------------------- #
# Tile / budget selection
# --------------------------------------------------------------------------- #
def _vmem_budgets():
    """Returns (per-step tile VMEM byte budget, scoped vmem_limit_bytes)."""
    vmem_cap = None
    try:
        info = pltpu.get_tpu_info()
        for name in ("vmem_capacity_bytes", "vmem_size_bytes", "vmem_bytes"):
            v = getattr(info, name, None)
            if v:
                vmem_cap = int(v)
                break
    except Exception:
        vmem_cap = None
    if vmem_cap is not None and vmem_cap > 96 * 1024 * 1024:
        # v5e / v6e: 128 MiB physical VMEM -> big tiles, few grid steps.
        return 28 * 1024 * 1024, 64 * 1024 * 1024
    # v7x-class (64 MiB per TensorCore) or unknown: stay well under the cap.
    return 12 * 1024 * 1024, 28 * 1024 * 1024


def _choose_tiles(nr, hw, itemsize, budget):
    """Pick (tr rows, thw lanes, single_pass) so 2x input buffers + 2x lane-padded
    output buffers + one f32 accumulator fit inside `budget` bytes of VMEM."""
    row_gran = max(8, 32 // itemsize)  # sublane packing: 8 f32 / 16 bf16 / 32 int8
    nr_ceil = _round_up(nr, row_gran)

    def per_row_bytes(thw):
        return 2 * thw * itemsize + 3 * _LANE * 4

    # --- H*W (lane / reduction) tile ---------------------------------------
    single_pass = (hw <= _MAX_LANE_CHUNKS * _LANE
                   and per_row_bytes(hw) * row_gran <= budget)
    if single_pass:
        thw = hw  # full extent: always a legal last-dim block
    else:
        thw = _round_down((budget // row_gran - 3 * _LANE * 4) // (2 * itemsize),
                          _LANE)
        thw = min(thw, _MAX_LANE_CHUNKS * _LANE, max(_round_down(hw, _LANE), _LANE))
        thw = max(thw, _LANE)

    # --- row (N*C / sublane) tile -------------------------------------------
    tr = _round_down(budget // per_row_bytes(thw), row_gran)
    tr = max(tr, row_gran)
    tr = min(tr, nr_ceil)                                      # no overshoot
    tr = min(tr, _round_up(max(_cdiv(nr, 2), 1), row_gran))    # >=2 row tiles (megacore)
    tr = min(tr, 8192)                                         # bound (tr,1)/(tr,128) buffers
    tr = max(tr, row_gran)
    if nr < row_gran:
        tr = nr  # block == full row extent (legal; avoids block > array dim)
    return tr, thw, single_pass


# --------------------------------------------------------------------------- #
# Wrapper
# --------------------------------------------------------------------------- #
def avg_pool(x_nchw: jax.Array, *, tile_budget_bytes: int | None = None) -> jax.Array:
    """AdaptiveAvgPool2d((1,1)) + flatten(1) for an (N, C, H, W) input -> (N, C)."""
    n, c, h, w = x_nchw.shape
    hw = h * w
    nr = n * c
    dtype = x_nchw.dtype
    itemsize = jnp.dtype(dtype).itemsize

    # Free contiguous view (no HBM transpose / no pad copy): (N,C,H,W) -> (N*C, H*W).
    x2d = x_nchw.reshape(nr, hw)

    budget, vmem_limit = _vmem_budgets()
    if tile_budget_bytes is not None:  # test hook / manual override
        budget = tile_budget_bytes
    tr, thw, single_pass = _choose_tiles(nr, hw, itemsize, budget)

    inv_hw = 1.0 / float(hw)
    row_tiles = _cdiv(nr, tr)
    cost = pl.CostEstimate(
        flops=nr * hw,
        transcendentals=0,
        bytes_accessed=nr * hw * itemsize + nr * itemsize,
    )

    if single_pass:
        out = pl.pallas_call(
            functools.partial(_avgpool_onepass_kernel, inv_hw=inv_hw, hw=hw),
            out_shape=jax.ShapeDtypeStruct((nr, 1), dtype),
            grid_spec=pltpu.PrefetchScalarGridSpec(
                num_scalar_prefetch=0,
                grid=(row_tiles,),
                in_specs=[pl.BlockSpec((tr, hw), lambda i: (i, 0))],
                out_specs=pl.BlockSpec((tr, 1), lambda i: (i, 0)),
            ),
            compiler_params=pltpu.CompilerParams(
                dimension_semantics=("parallel",),
                vmem_limit_bytes=vmem_limit,
            ),
            cost_estimate=cost,
        )(x2d)
    else:
        hw_tiles = _cdiv(hw, thw)
        out = pl.pallas_call(
            functools.partial(_avgpool_tiled_kernel, inv_hw=inv_hw, hw=hw, thw=thw),
            out_shape=jax.ShapeDtypeStruct((nr, 1), dtype),
            grid_spec=pltpu.PrefetchScalarGridSpec(
                num_scalar_prefetch=0,
                grid=(row_tiles, hw_tiles),
                in_specs=[pl.BlockSpec((tr, thw), lambda i, k: (i, k))],
                # Output tile ignores the reduction index -> stays resident.
                out_specs=pl.BlockSpec((tr, 1), lambda i, k: (i, 0)),
                scratch_shapes=[pltpu.VMEM((tr, _LANE), jnp.float32)],
            ),
            compiler_params=pltpu.CompilerParams(
                dimension_semantics=("parallel", "arbitrary"),
                vmem_limit_bytes=vmem_limit,
            ),
            cost_estimate=cost,
        )(x2d)

    return out.reshape(n, c)


if __name__ == "__main__":
    key = jax.random.PRNGKey(0)
    k1, k2, k3, k4 = jax.random.split(key, 4)

    # Primary case (NCHW, matches the PyTorch module).
    x = jax.random.normal(k1, (2, 4, 16, 16), dtype=jnp.float32)
    y = avg_pool(x)
    assert y.shape == (2, 4)
    assert jnp.allclose(y, jnp.mean(x, axis=(2, 3)), atol=1e-5, rtol=1e-5)

    # Ragged rows (N*C = 15, not a multiple of 8) + small 7x7 head spatial extent.
    x2 = jax.random.normal(k2, (3, 5, 7, 7), dtype=jnp.float32)
    y2 = avg_pool(x2)
    assert jnp.allclose(y2, jnp.mean(x2, axis=(2, 3)), atol=1e-5, rtol=1e-5)

    # bf16 input, larger spatial extent, dtype-aware row tile.
    x3 = jax.random.normal(k3, (2, 8, 64, 64), dtype=jnp.bfloat16)
    y3 = avg_pool(x3)
    assert jnp.allclose(
        y3.astype(jnp.float32),
        jnp.mean(x3.astype(jnp.float32), axis=(2, 3)),
        atol=1e-2, rtol=1e-2,
    )

    # Force the multi-step reduction path (2-D grid, in-kernel masking of the
    # ragged H*W tail block) by shrinking the tile byte budget.
    x4 = jax.random.normal(k4, (2, 4, 60, 60), dtype=jnp.float32)
    y4 = avg_pool(x4, tile_budget_bytes=96 * 1024)
    assert jnp.allclose(y4, jnp.mean(x4, axis=(2, 3)), atol=1e-5, rtol=1e-5)

    jax.block_until_ready((y, y2, y3, y4))
    print("KERNEL_OK")
</pallas_src>

<mosaic_0001>
module attributes {stable_mosaic.version = 11 : i64} {
  func.func @_avgpool_onepass_kernel(%arg0: i32, %arg1: memref<8x256xf32, #tpu.memory_space<vmem>>, %arg2: memref<8x1xf32, #tpu.memory_space<vmem>>) attributes {dimension_semantics = [#tpu.dimension_semantics<parallel>], iteration_bounds = array<i64: 1>, scalar_prefetch = 0 : i64, scratch_operands = 0 : i64, tpu.core_type = #tpu.core_type<tc>, window_params = [{transform_indices = @transform_0, window_bounds = array<i64: 8, 256>}, {transform_indices = @transform_1, window_bounds = array<i64: 8, 1>}]} {
    %c0 = arith.constant 0 : index
    %c0_0 = arith.constant 0 : index
    %0 = vector.load %arg1[%c0, %c0_0] : memref<8x256xf32, #tpu.memory_space<vmem>>, vector<8x128xf32>
    %c0_1 = arith.constant 0 : index
    %c128 = arith.constant 128 : index
    %1 = vector.load %arg1[%c0_1, %c128] : memref<8x256xf32, #tpu.memory_space<vmem>>, vector<8x128xf32>
    %2 = arith.addf %0, %1 : vector<8x128xf32>
    %cst = arith.constant dense<0.000000e+00> : vector<8xf32>
    %3 = vector.multi_reduction <add>, %2, %cst [1] : vector<8x128xf32> to vector<8xf32>
    %4 = vector.shape_cast %3 : vector<8xf32> to vector<8x1xf32>
    %cst_2 = arith.constant 3.906250e-03 : f32
    %5 = vector.broadcast %cst_2 : f32 to vector<8x1xf32>
    %6 = arith.mulf %4, %5 : vector<8x1xf32>
    %c0_3 = arith.constant 0 : index
    %c0_4 = arith.constant 0 : index
    %7 = vector.load %arg2[%c0_3, %c0_4] : memref<8x1xf32, #tpu.memory_space<vmem>>, vector<8x1xf32>
    tpu.vector_store %arg2[%c0_3, %c0_4], %6 {strides = array<i32>} : memref<8x1xf32, #tpu.memory_space<vmem>>, vector<8x1xf32>,
    return
  }
  func.func @transform_0(%arg0: i32) -> (i32, i32) {
    %c0_i32 = arith.constant 0 : i32
    %c0_i32_0 = arith.constant 0 : i32
    return %arg0, %c0_i32 : i32, i32
  }
  func.func @transform_1(%arg0: i32) -> (i32, i32) {
    %c0_i32 = arith.constant 0 : i32
    %c0_i32_0 = arith.constant 0 : i32
    return %arg0, %c0_i32 : i32, i32
  }
}

</mosaic_0001>

<llo_original>
// kernel: tpu_custom_call.1
$region0: #{tpu_custom_call.1}
  #allocation0 [shape = 'u32[]', space=smem, size = 0x4, offset = 0x4, fixed_abs, tag = 'smem constant byte address 0x4 - core index']
  #allocation1 [shape = 'u32[144,128]{1,0:T(1,128)}', space=vmem, size = 0x12000, scoped, tag = 'internal scratch']
  %s0 = inlined_call_operand.hbm [shape: f32[8,256], index: 0, kind: input, shape index: {}]
  %s1 = inlined_call_operand.vmem [shape: f32[8,1], index: 1, kind: output, shape index: {}]
  %s2 = sld [smem:[#allocation0]]
  $region18: #{tpu_custom_call.1} parent=0
    _
  %s4 = ssub.s32 1, %s2
  %s5 = scalar_select 0, %s4, %s2
  $region1: #{tpu_custom_call.1} parent=0
    #allocation2 [shape = 'u8[8192]{0}', space=vmem, size = 0x2000, scoped, tag = 'input window, operand 0, single buffered']
    #allocation3 [shape = 's32[1]{0}', space=sflag, size = 0x4, scoped, tag = 'scoped memory for tpu_custom_call.1']
    %6 = vsyncpa [#allocation3], 0
    // Predicated region
    $region2: #{tpu_custom_call.1} parent=1 // pred_check
      _
    $region3: #{tpu_custom_call.1} parent=1 // pred_check_branch
      %8 = sbr.rel (0) target = $region5
    $region4: #{tpu_custom_call.1} parent=1 // pred_region
      %s10 = ssub.s32 256, 256
      %11 = vsyncadd [#allocation3], %s10
      %s13 = sshll.u32 [#allocation2], 4
      %s14 = int_to_ptr.vmem [resolvable:$true] %s13
      %16 = dma.hbm_to_vmem [thread:$0]  %s0, 256, %s14, [#allocation3]
    $region5: #{tpu_custom_call.1} parent=1 // pred_fallthru
      _
    // Predicated region
    $region6: #{tpu_custom_call.1} parent=1 // pred_check
      _
    $region7: #{tpu_custom_call.1} parent=1 // pred_check_branch
      %18 = sbr.rel (0) target = $region9
    $region8: #{tpu_custom_call.1} parent=1 // pred_region
      %19 = dma.done [#allocation3], 256
    $region9: #{tpu_custom_call.1} parent=1 // pred_fallthru
      _
    %v20 = vld [vmem:[#allocation2] sm:$0xff]
    %v21 = vld [vmem:[#allocation2 + $0x8] sm:$0xff]
    %v22 = vadd.f32 %v20, %v21
    %23 = vadd.xlane.f32.xlu0 %v22
    %v24 = vpop.xlane.xlu0 %23
    %v25 = vmul.f32 %v24, 0.00390625
    %vm26 = vcmask 7168
    %27 = vst.msk [vmem:[%s1] sm:$0xff] %vm26, %v25
    // Predicated region
    $region10: #{tpu_custom_call.1} parent=1 // pred_check
      _
    $region11: #{tpu_custom_call.1} parent=1 // pred_check_branch
      %29 = sbr.rel (0) target = $region13
    $region12: #{tpu_custom_call.1} parent=1 // pred_region
      _
    $region13: #{tpu_custom_call.1} parent=1 // pred_fallthru
      _
    // Predicated region
    $region14: #{tpu_custom_call.1} parent=1 // pred_check
      _
    $region15: #{tpu_custom_call.1} parent=1 // pred_check_branch
      %31 = sbr.rel (0) target = $region17
    $region16: #{tpu_custom_call.1} parent=1 // pred_region
      _
    $region17: #{tpu_custom_call.1} parent=1 // pred_fallthru
      _
    %32 = vsyncpa [#allocation3], 1

</llo_original>
